<compile_context>
chip_gen: v7x
topology: tpu7x:2x2x1
jax: 0.10.0
libtpu: 0.0.40
codegen_flags: <defaults>
</compile_context>

<pallas_src>
import jax
import jax.numpy as jnp
from jax.experimental import pallas as pl
from jax.experimental.pallas import tpu as pltpu

_SUBLANE = 8


def _round_up(n, m):
    return ((n + m - 1) // m) * m


def _cdiv(a, b):
    return -(-a // b)


def blob_mlp_kernel(x_ref, w1_ref, b1_ref, w2_ref, b2_ref, w3_ref, b3_ref, o_ref):
    # Layer 1: Linear + ReLU
    h = jnp.dot(x_ref[...], w1_ref[...], preferred_element_type=jnp.float32)
    h = jnp.maximum(h + b1_ref[...], 0.0)
    # Layer 2: Linear + ReLU
    h = jnp.dot(h, w2_ref[...], preferred_element_type=jnp.float32)
    h = jnp.maximum(h + b2_ref[...], 0.0)
    # Layer 3: Linear (logits) -- stored at the real (narrow) logit width.
    out = jnp.dot(h, w3_ref[...], preferred_element_type=jnp.float32) + b3_ref[...]
    o_ref[...] = out.astype(o_ref.dtype)


def _choose_batch_tiling(batch, block_batch, min_rows_for_split=256):
    """Pick (tile_rows, padded_batch, n_steps) for the batch grid.

    Derives the tile from the batch so the grid divides evenly (minimal/no
    padding), and forces >= 2 grid steps for large single-tile batches so the
    ("parallel",) axis can actually shard across the two TensorCores on v7x.
    """
    bp8 = _round_up(batch, _SUBLANE)
    n_steps = max(_cdiv(bp8, block_batch), 1)
    if n_steps == 1 and bp8 >= 2 * min_rows_for_split:
        n_steps = 2  # v7x megacore: leave no TC idle when there is enough work
    tb = _round_up(_cdiv(bp8, n_steps), _SUBLANE)
    return tb, n_steps * tb, n_steps


def blob_model_forward(x, params, *, block_batch=2048, vmem_limit_bytes=None):
    """x: (B, input_features) f32; params: dict of (in, out)-layout weights.

    Per-step VMEM budget (f32; every (rows, <=128) buffer still occupies
    ~512 B/row because the minor dim pads to the 128-lane tile):
        x block   : 512 B/row * 2 (double-buffered)
        out block : 512 B/row * 2
        h1/h2/out temps : ~512 B/row each (partially reused by the compiler)
        => ~3.5 KB/row worst case, plus ~tens of KB of resident weights.
    block_batch guidance:
        v5e : keep <= 2048-4096 (16 MiB scoped-VMEM default of 128 MiB phys).
        v6e : up to ~8192; pass vmem_limit_bytes=~48-64 MiB if needed.
        v7x : budget against 64 MiB *physical* (32 MiB scoped default) and
              keep >= 2 grid steps (enforced by _choose_batch_tiling) so both
              TensorCores get work.
    """
    w1, b1 = params["w1"], params["b1"]
    w2, b2 = params["w2"], params["b2"]
    w3, b3 = params["w3"], params["b3"]

    B, in_f = x.shape
    out_f = w3.shape[1]

    tb, bp, n_steps = _choose_batch_tiling(B, block_batch)

    # Only pad the batch when the tiling does not already divide it (no-op /
    # skipped entirely for aligned batches -> no extra HBM pass over x).
    xp = x if bp == B else jnp.pad(x, ((0, bp - B), (0, 0)))

    # Constant index_map => tiny weights/biases stay resident in VMEM across
    # all grid steps; only x / out blocks are streamed.
    def resident(a):
        return pl.BlockSpec(a.shape, lambda i: (0,) * a.ndim)

    out = pl.pallas_call(
        blob_mlp_kernel,
        out_shape=jax.ShapeDtypeStruct((bp, out_f), x.dtype),
        grid=(n_steps,),
        in_specs=[
            pl.BlockSpec((tb, in_f), lambda i: (i, 0)),   # x: tiled over batch
            resident(w1), resident(b1),
            resident(w2), resident(b2),
            resident(w3), resident(b3),
        ],
        # Narrow, unpadded logit store: out_f columns only (fix #1).
        out_specs=pl.BlockSpec((tb, out_f), lambda i: (i, 0)),
        compiler_params=pltpu.CompilerParams(
            dimension_semantics=("parallel",),  # shard batch grid across TCs (v7x)
            vmem_limit_bytes=vmem_limit_bytes,
        ),
    )(xp, w1, b1, w2, b2, w3, b3)

    # Row-slice only when batch padding was actually added.
    return out if bp == B else out[:B]


def init_params(key, input_features, out_features, hidden_units=8):
    ks = jax.random.split(key, 6)

    def linear(kw, kb, fan_in, fan_out):
        bound = 1.0 / jnp.sqrt(fan_in)
        w = jax.random.uniform(kw, (fan_in, fan_out), jnp.float32, -bound, bound)
        b = jax.random.uniform(kb, (1, fan_out), jnp.float32, -bound, bound)
        return w, b

    w1, b1 = linear(ks[0], ks[1], input_features, hidden_units)
    w2, b2 = linear(ks[2], ks[3], hidden_units, hidden_units)
    w3, b3 = linear(ks[4], ks[5], hidden_units, out_features)
    return {"w1": w1, "b1": b1, "w2": w2, "b2": b2, "w3": w3, "b3": b3}


def _reference(x, params):
    h = jnp.maximum(x @ params["w1"] + params["b1"], 0.0)
    h = jnp.maximum(h @ params["w2"] + params["b2"], 0.0)
    return h @ params["w3"] + params["b3"]


if __name__ == "__main__":
    key = jax.random.PRNGKey(0)
    k_x, k_p, k_x2 = jax.random.split(key, 3)

    # Classic "blobs" setup: 2 input features, 4 classes, hidden_units=8.
    input_features, out_features, hidden_units = 2, 4, 8
    params = init_params(k_p, input_features, out_features, hidden_units)

    # Small batch: single grid step, no padding, no wrapper slice.
    batch = 8
    x = jax.random.normal(k_x, (batch, input_features), jnp.float32)
    out = jax.block_until_ready(blob_model_forward(x, params))
    ref = _reference(x, params)
    assert out.shape == (batch, out_features)
    assert jnp.allclose(out, ref, atol=1e-5, rtol=1e-5)

    # Larger, non-multiple batch with default tiling: forced 2-step split
    # (v7x megacore path) + batch padding/slicing.
    batch2 = 1000
    x2 = jax.random.normal(k_x2, (batch2, input_features), jnp.float32)
    out2 = jax.block_until_ready(blob_model_forward(x2, params))
    ref2 = _reference(x2, params)
    assert out2.shape == (batch2, out_features)
    assert jnp.allclose(out2, ref2, atol=1e-5, rtol=1e-5)

    # Same batch with small tiles: exercises the multi-block pipelined path.
    out3 = jax.block_until_ready(blob_model_forward(x2, params, block_batch=256))
    assert out3.shape == (batch2, out_features)
    assert jnp.allclose(out3, ref2, atol=1e-5, rtol=1e-5)

    print("KERNEL_OK")
</pallas_src>

<mosaic_0001>
module attributes {stable_mosaic.version = 11 : i64} {
  func.func @blob_mlp_kernel(%arg0: i32, %arg1: memref<8x2xf32, #tpu.memory_space<vmem>>, %arg2: memref<2x8xf32, #tpu.memory_space<vmem>>, %arg3: memref<1x8xf32, #tpu.memory_space<vmem>>, %arg4: memref<8x8xf32, #tpu.memory_space<vmem>>, %arg5: memref<1x8xf32, #tpu.memory_space<vmem>>, %arg6: memref<8x4xf32, #tpu.memory_space<vmem>>, %arg7: memref<1x4xf32, #tpu.memory_space<vmem>>, %arg8: memref<8x4xf32, #tpu.memory_space<vmem>>) attributes {dimension_semantics = [#tpu.dimension_semantics<parallel>], iteration_bounds = array<i64: 1>, scalar_prefetch = 0 : i64, scratch_operands = 0 : i64, tpu.core_type = #tpu.core_type<tc>, window_params = [{transform_indices = @transform_0, window_bounds = array<i64: 8, 2>}, {pipeline_mode = #tpu.pipeline_mode<synchronous>, transform_indices = @transform_1, window_bounds = array<i64: 2, 8>}, {pipeline_mode = #tpu.pipeline_mode<synchronous>, transform_indices = @transform_2, window_bounds = array<i64: 1, 8>}, {pipeline_mode = #tpu.pipeline_mode<synchronous>, transform_indices = @transform_3, window_bounds = array<i64: 8, 8>}, {pipeline_mode = #tpu.pipeline_mode<synchronous>, transform_indices = @transform_4, window_bounds = array<i64: 1, 8>}, {pipeline_mode = #tpu.pipeline_mode<synchronous>, transform_indices = @transform_5, window_bounds = array<i64: 8, 4>}, {pipeline_mode = #tpu.pipeline_mode<synchronous>, transform_indices = @transform_6, window_bounds = array<i64: 1, 4>}, {transform_indices = @transform_7, window_bounds = array<i64: 8, 4>}]} {
    %c0 = arith.constant 0 : index
    %c0_0 = arith.constant 0 : index
    %0 = vector.load %arg1[%c0, %c0_0] : memref<8x2xf32, #tpu.memory_space<vmem>>, vector<8x2xf32>
    %c0_1 = arith.constant 0 : index
    %c0_2 = arith.constant 0 : index
    %1 = vector.load %arg2[%c0_1, %c0_2] : memref<2x8xf32, #tpu.memory_space<vmem>>, vector<2x8xf32>
    %cst = arith.constant dense<0.000000e+00> : vector<8x8xf32>
    %2 = tpu.matmul %0, %1, %cst {dimension_numbers = #tpu.dot_dimension_numbers<[1], [0], [0], [1], [0, 0, 1, 1], [], []>} : vector<8x2xf32>, vector<2x8xf32>, vector<8x8xf32> -> vector<8x8xf32>
    %c0_3 = arith.constant 0 : index
    %c0_4 = arith.constant 0 : index
    %3 = vector.load %arg3[%c0_3, %c0_4] : memref<1x8xf32, #tpu.memory_space<vmem>>, vector<1x8xf32>
    %4 = vector.broadcast %3 : vector<1x8xf32> to vector<8x8xf32>
    %5 = arith.addf %2, %4 : vector<8x8xf32>
    %cst_5 = arith.constant 0.000000e+00 : f32
    %6 = vector.broadcast %cst_5 : f32 to vector<8x8xf32>
    %7 = arith.maximumf %5, %6 : vector<8x8xf32>
    %c0_6 = arith.constant 0 : index
    %c0_7 = arith.constant 0 : index
    %8 = vector.load %arg4[%c0_6, %c0_7] : memref<8x8xf32, #tpu.memory_space<vmem>>, vector<8x8xf32>
    %cst_8 = arith.constant dense<0.000000e+00> : vector<8x8xf32>
    %9 = tpu.matmul %7, %8, %cst_8 {dimension_numbers = #tpu.dot_dimension_numbers<[1], [0], [0], [1], [0, 0, 1, 1], [], []>} : vector<8x8xf32>, vector<8x8xf32>, vector<8x8xf32> -> vector<8x8xf32>
    %c0_9 = arith.constant 0 : index
    %c0_10 = arith.constant 0 : index
    %10 = vector.load %arg5[%c0_9, %c0_10] : memref<1x8xf32, #tpu.memory_space<vmem>>, vector<1x8xf32>
    %11 = vector.broadcast %10 : vector<1x8xf32> to vector<8x8xf32>
    %12 = arith.addf %9, %11 : vector<8x8xf32>
    %cst_11 = arith.constant 0.000000e+00 : f32
    %13 = vector.broadcast %cst_11 : f32 to vector<8x8xf32>
    %14 = arith.maximumf %12, %13 : vector<8x8xf32>
    %c0_12 = arith.constant 0 : index
    %c0_13 = arith.constant 0 : index
    %15 = vector.load %arg6[%c0_12, %c0_13] : memref<8x4xf32, #tpu.memory_space<vmem>>, vector<8x4xf32>
    %cst_14 = arith.constant dense<0.000000e+00> : vector<8x4xf32>
    %16 = tpu.matmul %14, %15, %cst_14 {dimension_numbers = #tpu.dot_dimension_numbers<[1], [0], [0], [1], [0, 0, 1, 1], [], []>} : vector<8x8xf32>, vector<8x4xf32>, vector<8x4xf32> -> vector<8x4xf32>
    %c0_15 = arith.constant 0 : index
    %c0_16 = arith.constant 0 : index
    %17 = vector.load %arg7[%c0_15, %c0_16] : memref<1x4xf32, #tpu.memory_space<vmem>>, vector<1x4xf32>
    %18 = vector.broadcast %17 : vector<1x4xf32> to vector<8x4xf32>
    %19 = arith.addf %16, %18 : vector<8x4xf32>
    %c0_17 = arith.constant 0 : index
    %c0_18 = arith.constant 0 : index
    %20 = vector.load %arg8[%c0_17, %c0_18] : memref<8x4xf32, #tpu.memory_space<vmem>>, vector<8x4xf32>
    tpu.vector_store %arg8[%c0_17, %c0_18], %19 {strides = array<i32>} : memref<8x4xf32, #tpu.memory_space<vmem>>, vector<8x4xf32>,
    return
  }
  func.func @transform_0(%arg0: i32) -> (i32, i32) {
    %c0_i32 = arith.constant 0 : i32
    %c0_i32_0 = arith.constant 0 : i32
    return %arg0, %c0_i32 : i32, i32
  }
  func.func @transform_1(%arg0: i32) -> (i32, i32) {
    %c0_i32 = arith.constant 0 : i32
    %c0_i32_0 = arith.constant 0 : i32
    %c0_i32_1 = arith.constant 0 : i32
    return %c0_i32, %c0_i32_0 : i32, i32
  }
  func.func @transform_2(%arg0: i32) -> (i32, i32) {
    %c0_i32 = arith.constant 0 : i32
    %c0_i32_0 = arith.constant 0 : i32
    %c0_i32_1 = arith.constant 0 : i32
    return %c0_i32, %c0_i32_0 : i32, i32
  }
  func.func @transform_3(%arg0: i32) -> (i32, i32) {
    %c0_i32 = arith.constant 0 : i32
    %c0_i32_0 = arith.constant 0 : i32
    %c0_i32_1 = arith.constant 0 : i32
    return %c0_i32, %c0_i32_0 : i32, i32
  }
  func.func @transform_4(%arg0: i32) -> (i32, i32) {
    %c0_i32 = arith.constant 0 : i32
    %c0_i32_0 = arith.constant 0 : i32
    %c0_i32_1 = arith.constant 0 : i32
    return %c0_i32, %c0_i32_0 : i32, i32
  }
  func.func @transform_5(%arg0: i32) -> (i32, i32) {
    %c0_i32 = arith.constant 0 : i32
    %c0_i32_0 = arith.constant 0 : i32
    %c0_i32_1 = arith.constant 0 : i32
    return %c0_i32, %c0_i32_0 : i32, i32
  }
  func.func @transform_6(%arg0: i32) -> (i32, i32) {
    %c0_i32 = arith.constant 0 : i32
    %c0_i32_0 = arith.constant 0 : i32
    %c0_i32_1 = arith.constant 0 : i32
    return %c0_i32, %c0_i32_0 : i32, i32
  }
  func.func @transform_7(%arg0: i32) -> (i32, i32) {
    %c0_i32 = arith.constant 0 : i32
    %c0_i32_0 = arith.constant 0 : i32
    return %arg0, %c0_i32 : i32, i32
  }
}

</mosaic_0001>

<llo_original>
// kernel: tpu_custom_call.1
$region0: #{tpu_custom_call.1}
  #allocation0 [shape = 'u32[]', space=smem, size = 0x4, offset = 0x4, fixed_abs, tag = 'smem constant byte address 0x4 - core index']
  #allocation1 [shape = 'u32[144,128]{1,0:T(1,128)}', space=vmem, size = 0x12000, scoped, tag = 'internal scratch']
  %s0 = inlined_call_operand.vmem [shape: f32[8,2], index: 0, kind: input, shape index: {}]
  %s1 = inlined_call_operand.vmem [shape: f32[2,8], index: 1, kind: input, shape index: {}]
  %s2 = inlined_call_operand.vmem [shape: f32[1,8], index: 2, kind: input, shape index: {}]
  %s3 = inlined_call_operand.vmem [shape: f32[8,8], index: 3, kind: input, shape index: {}]
  %s4 = inlined_call_operand.vmem [shape: f32[1,8], index: 4, kind: input, shape index: {}]
  %s5 = inlined_call_operand.vmem [shape: f32[8,4], index: 5, kind: input, shape index: {}]
  %s6 = inlined_call_operand.vmem [shape: f32[1,4], index: 6, kind: input, shape index: {}]
  %s7 = inlined_call_operand.vmem [shape: f32[8,4], index: 7, kind: output, shape index: {}]
  %s8 = sld [smem:[#allocation0]]
  $region38: #{tpu_custom_call.1} parent=0
    _
  %s10 = ssub.s32 1, %s8
  %s11 = scalar_select 0, %s10, %s8
  // Predicated region
  $region2: #{tpu_custom_call.1} parent=0 // pred_check
    _
  $region3: #{tpu_custom_call.1} parent=0 // pred_check_branch
    %13 = sbr.rel (0) target = $region5
  $region4: #{tpu_custom_call.1} parent=0 // pred_region
    _
  $region5: #{tpu_custom_call.1} parent=0 // pred_fallthru
    _
  // Predicated region
  $region6: #{tpu_custom_call.1} parent=0 // pred_check
    _
  $region7: #{tpu_custom_call.1} parent=0 // pred_check_branch
    %15 = sbr.rel (0) target = $region9
  $region8: #{tpu_custom_call.1} parent=0 // pred_region
    _
  $region9: #{tpu_custom_call.1} parent=0 // pred_fallthru
    _
  // Predicated region
  $region10: #{tpu_custom_call.1} parent=0 // pred_check
    _
  $region11: #{tpu_custom_call.1} parent=0 // pred_check_branch
    %17 = sbr.rel (0) target = $region13
  $region12: #{tpu_custom_call.1} parent=0 // pred_region
    _
  $region13: #{tpu_custom_call.1} parent=0 // pred_fallthru
    _
  // Predicated region
  $region14: #{tpu_custom_call.1} parent=0 // pred_check
    _
  $region15: #{tpu_custom_call.1} parent=0 // pred_check_branch
    %19 = sbr.rel (0) target = $region17
  $region16: #{tpu_custom_call.1} parent=0 // pred_region
    _
  $region17: #{tpu_custom_call.1} parent=0 // pred_fallthru
    _
  // Predicated region
  $region18: #{tpu_custom_call.1} parent=0 // pred_check
    _
  $region19: #{tpu_custom_call.1} parent=0 // pred_check_branch
    %21 = sbr.rel (0) target = $region21
  $region20: #{tpu_custom_call.1} parent=0 // pred_region
    _
  $region21: #{tpu_custom_call.1} parent=0 // pred_fallthru
    _
  // Predicated region
  $region22: #{tpu_custom_call.1} parent=0 // pred_check
    _
  $region23: #{tpu_custom_call.1} parent=0 // pred_check_branch
    %23 = sbr.rel (0) target = $region25
  $region24: #{tpu_custom_call.1} parent=0 // pred_region
    _
  $region25: #{tpu_custom_call.1} parent=0 // pred_fallthru
    _
  // Predicated region
  $region26: #{tpu_custom_call.1} parent=0 // pred_check
    _
  $region27: #{tpu_custom_call.1} parent=0 // pred_check_branch
    %25 = sbr.rel (0) target = $region29
  $region28: #{tpu_custom_call.1} parent=0 // pred_region
    _
  $region29: #{tpu_custom_call.1} parent=0 // pred_fallthru
    _
  %v26 = vld [vmem:[%s0] sm:$0xff]
  %v27 = vld [vmem:[%s1] sm:$0x3]
  %v28 = vld [vmem:[%s2] sm:$0x1]
  %v30 = vlaneseq
  %v31 = vshrl.u32 %v30, 7
  %v32 = vsub.s32 0, %v31
  %v33 = vrot.slane %v28, %v32
  %vm35 = vcmask 15360
  %v37 = vsel %vm35, %v26, 0
  %vm39 = vcmask 1041408
  %v41 = vsel %vm39, %v27, 0
  %43 = vmatprep.subr.mxu0 0.0
  %44 = vmatpush1.msra.mxu0 %v41
  %45 = vmatprep.subr.mxu0 0.0
  %46 = vmatpush1.msra.mxu0 0.0
  %47 = vmatprep.subr.mxu0 0.0
  %48 = vmatpush1.msra.mxu0 0.0
  %49 = vmatprep.subr.mxu0 0.0
  %50 = vmatpush1.msra.mxu0 0.0
  %51 = vmatprep.subr.mxu0 0.0
  %52 = vmatpush1.msra.mxu0 0.0
  %53 = vmatprep.subr.mxu0 0.0
  %54 = vmatpush1.msra.mxu0 0.0
  %55 = vmatprep.subr.mxu0 0.0
  %56 = vmatpush1.msra.mxu0 0.0
  %57 = vmatprep.subr.mxu0 0.0
  %58 = vmatpush1.msra.mxu0 0.0
  %59 = vmatprep.subr.mxu0 0.0
  %60 = vmatpush1.msra.mxu0 0.0
  %61 = vmatprep.subr.mxu0 0.0
  %62 = vmatpush1.msra.mxu0 0.0
  %63 = vmatprep.subr.mxu0 0.0
  %64 = vmatpush1.msra.mxu0 0.0
  %65 = vmatprep.subr.mxu0 0.0
  %66 = vmatpush1.msra.mxu0 0.0
  %67 = vmatprep.subr.mxu0 0.0
  %68 = vmatpush1.msra.mxu0 0.0
  %69 = vmatprep.subr.mxu0 0.0
  %70 = vmatpush1.msra.mxu0 0.0
  %71 = vmatprep.subr.mxu0 0.0
  %72 = vmatpush1.msra.mxu0 0.0
  %73 = vmatprep.subr.mxu0 0.0
  %74 = vmatpush1.msra.mxu0 0.0
  %75 = vmatprep.subr.mxu0 0.0
  %76 = vmatpush1.msra.mxu0 0.0
  %77 = vmatprep.subr.mxu0 0.0
  %78 = vmatpush1.msra.mxu0 0.0
  %79 = vmatprep.subr.mxu0 0.0
  %80 = vmatpush1.msra.mxu0 0.0
  %81 = vmatprep.subr.mxu0 0.0
  %82 = vmatpush1.msra.mxu0 0.0
  %83 = vmatprep.subr.mxu0 0.0
  %84 = vmatpush1.msra.mxu0 0.0
  %85 = vmatprep.subr.mxu0 0.0
  %86 = vmatpush1.msra.mxu0 0.0
  %87 = vmatprep.subr.mxu0 0.0
  %88 = vmatpush1.msra.mxu0 0.0
  %89 = vmatprep.subr.mxu0 0.0
  %90 = vmatpush1.msra.mxu0 0.0
  %91 = vmatprep.subr.mxu0 0.0
  %92 = vmatpush1.msra.mxu0 0.0
  %93 = vmatprep.subr.mxu0 0.0
  %94 = vmatpush1.msra.mxu0 0.0
  %95 = vmatprep.subr.mxu0 0.0
  %96 = vmatpush1.msra.mxu0 0.0
  %97 = vmatprep.subr.mxu0 0.0
  %98 = vmatpush1.msra.mxu0 0.0
  %99 = vmatprep.subr.mxu0 0.0
  %100 = vmatpush1.msra.mxu0 0.0
  %101 = vmatprep.subr.mxu0 0.0
  %102 = vmatpush1.msra.mxu0 0.0
  %103 = vmatprep.subr.mxu0 0.0
  %104 = vmatpush1.msra.mxu0 0.0
  %105 = vmatprep.subr.mxu0 0.0
  %106 = vmatpush1.msra.mxu0 0.0
  %107 = vmatprep.mubr.f32.mxu0 0.0
  %108 = vmatmul.mubr.f32.gmra.mrb[0].mxu0 %v37
  %v109 = vpop.f32.mrb[0].mxu0
  %v110 = vadd.f32 %v33, %v109
  %v111 = vpop.f32.mrb[0].mxu0
  %112 = vdwg.mxu0
  %v113 = vmax.f32 %v110, 0.0
  %v114 = vld [vmem:[%s3] sm:$0xff]
  %v115 = vld [vmem:[%s4] sm:$0x1]
  %v117 = vlaneseq
  %v118 = vshrl.u32 %v117, 7
  %v119 = vsub.s32 0, %v118
  %v120 = vrot.slane %v115, %v119
  %vm122 = vcmask 64512
  %v124 = vsel %vm122, %v113, 0
  %126 = vmatprep.subr.mxu0 0.0
  %127 = vmatpush1.msra.mxu0 %v114
  %128 = vmatprep.subr.mxu0 0.0
  %129 = vmatpush1.msra.mxu0 0.0
  %130 = vmatprep.subr.mxu0 0.0
  %131 = vmatpush1.msra.mxu0 0.0
  %132 = vmatprep.subr.mxu0 0.0
  %133 = vmatpush1.msra.mxu0 0.0
  %134 = vmatprep.subr.mxu0 0.0
  %135 = vmatpush1.msra.mxu0 0.0
  %136 = vmatprep.subr.mxu0 0.0
  %137 = vmatpush1.msra.mxu0 0.0
  %138 = vmatprep.subr.mxu0 0.0
  %139 = vmatpush1.msra.mxu0 0.0
  %140 = vmatprep.subr.mxu0 0.0
  %141 = vmatpush1.msra.mxu0 0.0
  %142 = vmatprep.subr.mxu0 0.0
  %143 = vmatpush1.msra.mxu0 0.0
  %144 = vmatprep.subr.mxu0 0.0
  %145 = vmatpush1.msra.mxu0 0.0
  %146 = vmatprep.subr.mxu0 0.0
  %147 = vmatpush1.msra.mxu0 0.0
  %148 = vmatprep.subr.mxu0 0.0
  %149 = vmatpush1.msra.mxu0 0.0
  %150 = vmatprep.subr.mxu0 0.0
  %151 = vmatpush1.msra.mxu0 0.0
  %152 = vmatprep.subr.mxu0 0.0
  %153 = vmatpush1.msra.mxu0 0.0
  %154 = vmatprep.subr.mxu0 0.0
  %155 = vmatpush1.msra.mxu0 0.0
  %156 = vmatprep.subr.mxu0 0.0
  %157 = vmatpush1.msra.mxu0 0.0
  %158 = vmatprep.subr.mxu0 0.0
  %159 = vmatpush1.msra.mxu0 0.0
  %160 = vmatprep.subr.mxu0 0.0
  %161 = vmatpush1.msra.mxu0 0.0
  %162 = vmatprep.subr.mxu0 0.0
  %163 = vmatpush1.msra.mxu0 0.0
  %164 = vmatprep.subr.mxu0 0.0
  %165 = vmatpush1.msra.mxu0 0.0
  %166 = vmatprep.subr.mxu0 0.0
  %167 = vmatpush1.msra.mxu0 0.0
  %168 = vmatprep.subr.mxu0 0.0
  %169 = vmatpush1.msra.mxu0 0.0
  %170 = vmatprep.subr.mxu0 0.0
  %171 = vmatpush1.msra.mxu0 0.0
  %172 = vmatprep.subr.mxu0 0.0
  %173 = vmatpush1.msra.mxu0 0.0
  %174 = vmatprep.subr.mxu0 0.0
  %175 = vmatpush1.msra.mxu0 0.0
  %176 = vmatprep.subr.mxu0 0.0
  %177 = vmatpush1.msra.mxu0 0.0
  %178 = vmatprep.subr.mxu0 0.0
  %179 = vmatpush1.msra.mxu0 0.0
  %180 = vmatprep.subr.mxu0 0.0
  %181 = vmatpush1.msra.mxu0 0.0
  %182 = vmatprep.subr.mxu0 0.0
  %183 = vmatpush1.msra.mxu0 0.0
  %184 = vmatprep.subr.mxu0 0.0
  %185 = vmatpush1.msra.mxu0 0.0
  %186 = vmatprep.subr.mxu0 0.0
  %187 = vmatpush1.msra.mxu0 0.0
  %188 = vmatprep.subr.mxu0 0.0
  %189 = vmatpush1.msra.mxu0 0.0
  %190 = vmatprep.mubr.f32.mxu0 0.0
  %191 = vmatmul.mubr.f32.gmra.mrb[0].mxu0 %v124
  %v192 = vpop.f32.mrb[0].mxu0
  %v193 = vadd.f32 %v120, %v192
  %v194 = vpop.f32.mrb[0].mxu0
  %195 = vdwg.mxu0
  %v196 = vmax.f32 %v193, 0.0
  %v197 = vld [vmem:[%s5] sm:$0xff]
  %v198 = vld [vmem:[%s6] sm:$0x1]
  %v200 = vlaneseq
  %v201 = vshrl.u32 %v200, 7
  %v202 = vsub.s32 0, %v201
  %v203 = vrot.slane %v198, %v202
  %v206 = vsel %vm122, %v196, 0
  %208 = vmatprep.subr.mxu0 0.0
  %209 = vmatpush1.msra.mxu0 %v197
  %210 = vmatprep.subr.mxu0 0.0
  %211 = vmatpush1.msra.mxu0 0.0
  %212 = vmatprep.subr.mxu0 0.0
  %213 = vmatpush1.msra.mxu0 0.0
  %214 = vmatprep.subr.mxu0 0.0
  %215 = vmatpush1.msra.mxu0 0.0
  %216 = vmatprep.subr.mxu0 0.0
  %217 = vmatpush1.msra.mxu0 0.0
  %218 = vmatprep.subr.mxu0 0.0
  %219 = vmatpush1.msra.mxu0 0.0
  %220 = vmatprep.subr.mxu0 0.0
  %221 = vmatpush1.msra.mxu0 0.0
  %222 = vmatprep.subr.mxu0 0.0
  %223 = vmatpush1.msra.mxu0 0.0
  %224 = vmatprep.subr.mxu0 0.0
  %225 = vmatpush1.msra.mxu0 0.0
  %226 = vmatprep.subr.mxu0 0.0
  %227 = vmatpush1.msra.mxu0 0.0
  %228 = vmatprep.subr.mxu0 0.0
  %229 = vmatpush1.msra.mxu0 0.0
  %230 = vmatprep.subr.mxu0 0.0
  %231 = vmatpush1.msra.mxu0 0.0
  %232 = vmatprep.subr.mxu0 0.0
  %233 = vmatpush1.msra.mxu0 0.0
  %234 = vmatprep.subr.mxu0 0.0
  %235 = vmatpush1.msra.mxu0 0.0
  %236 = vmatprep.subr.mxu0 0.0
  %237 = vmatpush1.msra.mxu0 0.0
  %238 = vmatprep.subr.mxu0 0.0
  %239 = vmatpush1.msra.mxu0 0.0
  %240 = vmatprep.subr.mxu0 0.0
  %241 = vmatpush1.msra.mxu0 0.0
  %242 = vmatprep.subr.mxu0 0.0
  %243 = vmatpush1.msra.mxu0 0.0
  %244 = vmatprep.subr.mxu0 0.0
  %245 = vmatpush1.msra.mxu0 0.0
  %246 = vmatprep.subr.mxu0 0.0
  %247 = vmatpush1.msra.mxu0 0.0
  %248 = vmatprep.subr.mxu0 0.0
  %249 = vmatpush1.msra.mxu0 0.0
  %250 = vmatprep.subr.mxu0 0.0
  %251 = vmatpush1.msra.mxu0 0.0
  %252 = vmatprep.subr.mxu0 0.0
  %253 = vmatpush1.msra.mxu0 0.0
  %254 = vmatprep.subr.mxu0 0.0
  %255 = vmatpush1.msra.mxu0 0.0
  %256 = vmatprep.subr.mxu0 0.0
  %257 = vmatpush1.msra.mxu0 0.0
  %258 = vmatprep.subr.mxu0 0.0
  %259 = vmatpush1.msra.mxu0 0.0
  %260 = vmatprep.subr.mxu0 0.0
  %261 = vmatpush1.msra.mxu0 0.0
  %262 = vmatprep.subr.mxu0 0.0
  %263 = vmatpush1.msra.mxu0 0.0
  %264 = vmatprep.subr.mxu0 0.0
  %265 = vmatpush1.msra.mxu0 0.0
  %266 = vmatprep.subr.mxu0 0.0
  %267 = vmatpush1.msra.mxu0 0.0
  %268 = vmatprep.subr.mxu0 0.0
  %269 = vmatpush1.msra.mxu0 0.0
  %270 = vmatprep.subr.mxu0 0.0
  %271 = vmatpush1.msra.mxu0 0.0
  %272 = vmatprep.mubr.f32.mxu0 0.0
  %273 = vmatmul.mubr.f32.gmra.mrb[0].mxu0 %v206
  %v274 = vpop.f32.mrb[0].mxu0
  %v275 = vadd.f32 %v203, %v274
  %v276 = vpop.f32.mrb[0].mxu0
  %277 = vdwg.mxu0
  %vm278 = vcmask 31744
  %279 = vst.msk [vmem:[%s7] sm:$0xff] %vm278, %v275
  // Predicated region
  $region30: #{tpu_custom_call.1} parent=0 // pred_check
    _
  $region31: #{tpu_custom_call.1} parent=0 // pred_check_branch
    %281 = sbr.rel (0) target = $region33
  $region32: #{tpu_custom_call.1} parent=0 // pred_region
    _
  $region33: #{tpu_custom_call.1} parent=0 // pred_fallthru
    _
  // Predicated region
  $region34: #{tpu_custom_call.1} parent=0 // pred_check
    _
  $region35: #{tpu_custom_call.1} parent=0 // pred_check_branch
    %283 = sbr.rel (0) target = $region37
  $region36: #{tpu_custom_call.1} parent=0 // pred_region
    _
  $region37: #{tpu_custom_call.1} parent=0 // pred_fallthru
    _

</llo_original>
